<compile_context>
chip_gen: v6e
topology: v6e:2x2x1
jax: 0.10.0
libtpu: 0.0.40
codegen_flags: <defaults>
</compile_context>

<pallas_src>
import jax
import jax.numpy as jnp
from jax import lax
from jax.experimental import pallas as pl
from jax.experimental.pallas import tpu as pltpu  # noqa: F401  (kept for TPU params at scale)

LN_EPS = 1e-5


# ----------------------------- fused kernel -----------------------------------

def _gcn_fused_kernel(x_ref, at_ref, w1b_ref, b1b_ref, wrow_ref, tbias_ref,
                      mavg_ref, g1_ref, be1_ref, w2t_ref, b2t_ref,
                      g2_ref, be2_ref, fcb_ref, bfc_ref, o_ref):
    """Single invocation; everything resident in VMEM.

    x_ref   : (T*c_in, B*N) bf16   rows = (t, c_in), lanes = (batch, node)
    at_ref  : (B*N, B*N)    bf16   I_B (x) A^T  (0/1, exact in bf16)
    w1b_ref : (T*c_hid, T*c_in) bf16   I_T (x) W1^T
    wrow_ref: (1, T*c_hid)  bf16   folded  w1t (x) W2^T  (layer2-linear + tconv1)
    mavg_ref: (B*N, B*N)    f32    I_B (x) (ones/N)  -> per-batch node means
    fcb_ref : (B*N, B*nclass) f32  I_B (x) fc_mat
    """
    f32, bf16 = jnp.float32, jnp.bfloat16

    x = x_ref[...]
    at = at_ref[...]

    # ---- GCN layer 1: relu(Linear(A @ x)) ------------------------------------
    s1 = jnp.dot(x, at, preferred_element_type=f32)                   # (T*c_in, B*N)
    h1 = jnp.dot(w1b_ref[...], s1.astype(bf16),
                 preferred_element_type=f32)                          # (T*c_hid, B*N)
    h1 = jnp.maximum(h1 + b1b_ref[...], 0.0)

    # ---- folded [layer-2 linear + tconv1] applied BEFORE the 2nd aggregation --
    r = jnp.dot(wrow_ref[...], h1.astype(bf16),
                preferred_element_type=f32)                           # (1, B*N)
    t1 = (jnp.dot(r.astype(bf16), at, preferred_element_type=f32)
          + tbias_ref[...])                                           # (1, B*N)

    # ---- OutputLayer tail: stays in the packed (1, B*N) lane layout -----------
    mavg = mavg_ref[...]

    def layer_norm(z, g, b):
        # per-batch LayerNorm over the node axis via block-averaging matmuls;
        # rsqrt runs on the EUP (free slot).
        mu = jnp.dot(z, mavg, preferred_element_type=f32)
        zc = z - mu
        var = jnp.dot(zc * zc, mavg, preferred_element_type=f32)
        return zc * lax.rsqrt(var + LN_EPS) * g + b

    l1 = layer_norm(t1, g1_ref[...], be1_ref[...])
    x2 = l1 * w2t_ref[...] + b2t_ref[...]          # tconv2: 1x1 conv == scalar affine
    l2 = layer_norm(x2, g2_ref[...], be2_ref[...])
    o_ref[...] = (jnp.dot(l2, fcb_ref[...], preferred_element_type=f32)
                  + bfc_ref[...])                                     # (1, B*nclass)


# ----------------------------- argument construction ----------------------------

def _build_kernel_args(features, A, params):
    """Builds the exact (dtype-cast) operands the kernel consumes."""
    B, c_in, T, N = features.shape
    c_hid = params["W1"].shape[1]
    assert params["W2"].shape[1] == 1, "layer2 must produce a single channel"
    f32, bf16 = jnp.float32, jnp.bfloat16

    # (B, c_in, T, N) -> (T, c_in, B, N) -> (T*c_in, B*N): batch+node on lanes.
    x = jnp.transpose(features.astype(f32), (2, 1, 0, 3)).reshape(T * c_in, B * N)

    eye_b = jnp.eye(B, dtype=f32)
    eye_t = jnp.eye(T, dtype=f32)

    at = jnp.kron(eye_b, A.astype(f32).T)                                # (B*N, B*N)
    w1b = jnp.kron(eye_t, params["W1"].astype(f32).T)                    # (T*c_hid, T*c_in)
    b1b = jnp.tile(params["b1"].astype(f32).reshape(c_hid, 1), (T, 1))   # (T*c_hid, 1)

    # fold: wrow[0, t*c_hid + o] = w1t[0, t] * W2[o, 0]
    wrow = jnp.kron(params["w1t"].astype(f32), params["W2"].astype(f32).T)  # (1, T*c_hid)
    # fused bias: b2 enters as b2 * sum(w1t) (scalar), plus b1t
    tbias = (params["b2"].astype(f32) * jnp.sum(params["w1t"].astype(f32))
             + params["b1t"].astype(f32))                                # (1, 1)

    mavg = jnp.kron(eye_b, jnp.full((N, N), 1.0 / N, f32))               # (B*N, B*N)
    g1 = jnp.tile(params["g1"].astype(f32), (1, B))                      # (1, B*N)
    be1 = jnp.tile(params["be1"].astype(f32), (1, B))
    g2 = jnp.tile(params["g2"].astype(f32), (1, B))
    be2 = jnp.tile(params["be2"].astype(f32), (1, B))
    fcb = jnp.kron(eye_b, params["fc_mat"].astype(f32))                  # (B*N, B*nclass)

    return (x.astype(bf16), at.astype(bf16), w1b.astype(bf16), b1b,
            wrow.astype(bf16), tbias, mavg, g1, be1,
            params["w2t"].astype(f32), params["b2t"].astype(f32),
            g2, be2, fcb, params["bfc"].astype(f32))


# ----------------------------- wrapper -------------------------------------------

def gcn_forward(features, A, params, nclass):
    B, c_in, T, N = features.shape
    c_hid = params["W1"].shape[1]
    args = _build_kernel_args(features, A, params)

    BN, TCI, TCH = B * N, T * c_in, T * c_hid
    flops = 2 * (TCI * BN * BN          # aggregation 1
                 + TCH * TCI * BN       # block linear 1
                 + TCH * BN             # folded row vector
                 + BN * BN              # aggregation 2 (on the (1, B*N) row)
                 + 4 * BN * BN          # LayerNorm block-mean/var matmuls
                 + BN * B * nclass)     # fc
    bytes_accessed = int(sum(int(a.size) * a.dtype.itemsize for a in args)
                         + B * nclass * 4)

    out = pl.pallas_call(
        _gcn_fused_kernel,
        out_shape=jax.ShapeDtypeStruct((1, B * nclass), jnp.float32),
        # No grid: single step, whole (tiny) operands resident in VMEM.
        cost_estimate=pl.CostEstimate(flops=flops, transcendentals=2 * BN,
                                      bytes_accessed=bytes_accessed),
    )(*args)
    return out.reshape(B, nclass)


# ----------------------------- references -----------------------------------------

def kernel_math_reference(features, A, params):
    """Pure-JAX replay of the kernel math with IDENTICAL bf16 operand rounding."""
    B = features.shape[0]
    (x, at, w1b, b1b, wrow, tbias, mavg, g1, be1,
     w2t, b2t, g2, be2, fcb, bfc) = _build_kernel_args(features, A, params)
    hp = lax.Precision.HIGHEST
    f32, bf16 = jnp.float32, jnp.bfloat16
    up = lambda a: a.astype(f32)

    s1 = jnp.dot(up(x), up(at), precision=hp)
    h1 = jnp.maximum(jnp.dot(up(w1b), up(s1.astype(bf16)), precision=hp) + b1b, 0.0)
    r = jnp.dot(up(wrow), up(h1.astype(bf16)), precision=hp)
    t1 = jnp.dot(up(r.astype(bf16)), up(at), precision=hp) + tbias

    def ln(z, g, b):
        mu = jnp.dot(z, mavg, precision=hp)
        zc = z - mu
        var = jnp.dot(zc * zc, mavg, precision=hp)
        return zc / jnp.sqrt(var + LN_EPS) * g + b

    l1 = ln(t1, g1, be1)
    x2 = l1 * w2t + b2t
    l2 = ln(x2, g2, be2)
    return (jnp.dot(l2, fcb, precision=hp) + bfc).reshape(B, -1)


def reference_forward(features, A, params, nclass):
    """Module-faithful all-f32 reference (mirrors the PyTorch forward)."""
    hp = lax.Precision.HIGHEST
    x = jnp.transpose(features, (3, 0, 2, 1)).astype(jnp.float32)    # (N, B, T, c)
    h = jnp.einsum("vu,ubtc->vbtc", A, x, precision=hp)
    h = jnp.maximum(jnp.einsum("vbtc,co->vbto", h, params["W1"], precision=hp)
                    + params["b1"], 0.0)
    h = jnp.einsum("vu,ubtc->vbtc", A, h, precision=hp)
    h = (jnp.einsum("vbtc,co->vbto", h, params["W2"], precision=hp)
         + params["b2"][0, 0])
    xo = jnp.transpose(h, (1, 3, 2, 0))[:, 0]                        # (B, T, N)
    t1 = (jnp.einsum("btn,t->bn", xo, params["w1t"][0], precision=hp)
          + params["b1t"][0, 0])

    def ln(z, g, b):
        mu = z.mean(-1, keepdims=True)
        var = ((z - mu) ** 2).mean(-1, keepdims=True)
        return (z - mu) / jnp.sqrt(var + LN_EPS) * g + b

    l1 = ln(t1, params["g1"], params["be1"])
    x2 = l1 * params["w2t"][0, 0] + params["b2t"][0, 0]
    l2 = ln(x2, params["g2"], params["be2"])
    return jnp.dot(l2, params["fc_mat"], precision=hp) + params["bfc"][0, 0]


# ----------------------------- main ---------------------------------------------

if __name__ == "__main__":
    B, c_in, T, N = 2, 4, 8, 16        # batch, in-channels, time-steps, nodes
    c_hid, c_out, nclass = 32, 1, 3
    K = N - nclass + 1                 # fc conv kernel width

    key = jax.random.PRNGKey(0)
    ks = jax.random.split(key, 12)

    # deterministic dense adjacency: A[v, u] = 1 iff edge u -> v
    A = (jax.random.uniform(ks[0], (N, N)) < 0.3).astype(jnp.float32)
    features = jax.random.normal(ks[1], (B, c_in, T, N), dtype=jnp.float32)

    def u(k, shape, fan_in):
        bound = 1.0 / float(fan_in) ** 0.5
        return jax.random.uniform(k, shape, jnp.float32, -bound, bound)

    params = dict(
        # GCNLayer linears (stored as (in, out) so the math is x @ W + b)
        W1=u(ks[2], (c_in, c_hid), c_in),
        b1=u(ks[3], (c_hid,), c_in),
        W2=u(ks[4], (c_hid, c_out), c_hid),
        b2=u(ks[5], (1, 1), c_hid),
        # OutputLayer.tconv1: weight (1,1,T,1) -> row (1,T), bias -> (1,1)
        w1t=u(ks[6], (1, T), T),
        b1t=u(ks[7], (1, 1), T),
        # LayerNorm([N,1]) affine params (PyTorch default init: gamma=1, beta=0)
        g1=jnp.ones((1, N), jnp.float32),
        be1=jnp.zeros((1, N), jnp.float32),
        # OutputLayer.tconv2: 1x1 conv -> scalar weight/bias
        w2t=u(ks[8], (1, 1), 1),
        b2t=u(ks[9], (1, 1), 1),
        g2=jnp.ones((1, N), jnp.float32),
        be2=jnp.zeros((1, N), jnp.float32),
        # fc bias
        bfc=u(ks[10], (1, 1), K),
    )

    # fc conv kernel (1, K) turned into a banded (N, nclass) matrix:
    # out[b, k] = sum_j wfc[j] * x[b, k + j]
    wfc = u(ks[11], (K,), K)
    fc_mat = jnp.zeros((N, nclass), jnp.float32)
    for k in range(nclass):
        fc_mat = fc_mat.at[k:k + K, k].set(wfc)
    params["fc_mat"] = fc_mat

    fwd = jax.jit(lambda f, a, p: gcn_forward(f, a, p, nclass))
    out = jax.block_until_ready(fwd(features, A, params))
    assert out.shape == (B, nclass), out.shape

    # Tight check: pure-JAX replay of the exact kernel math (same bf16 operand
    # rounding); residual differences are MXU accumulation order / rsqrt only.
    ref_exact = kernel_math_reference(features, A, params)
    assert jnp.allclose(out, ref_exact, atol=1e-3, rtol=1e-3), (out, ref_exact)

    # Module-faithful all-f32 reference: bounds the bf16-operand rounding
    # (expected ~1e-2 absolute at these magnitudes).
    ref_mod = reference_forward(features, A, params, nclass)
    assert jnp.allclose(out, ref_mod, atol=5e-2, rtol=5e-2), (out, ref_mod)

    print("KERNEL_OK")
</pallas_src>

<mosaic_0001>
module attributes {stable_mosaic.version = 11 : i64} {
  func.func @_gcn_fused_kernel(%arg0: memref<32x32xbf16, #tpu.memory_space<vmem>>, %arg1: memref<32x32xbf16, #tpu.memory_space<vmem>>, %arg2: memref<256x32xbf16, #tpu.memory_space<vmem>>, %arg3: memref<256x1xf32, #tpu.memory_space<vmem>>, %arg4: memref<1x256xbf16, #tpu.memory_space<vmem>>, %arg5: memref<1x1xf32, #tpu.memory_space<vmem>>, %arg6: memref<32x32xf32, #tpu.memory_space<vmem>>, %arg7: memref<1x32xf32, #tpu.memory_space<vmem>>, %arg8: memref<1x32xf32, #tpu.memory_space<vmem>>, %arg9: memref<1x1xf32, #tpu.memory_space<vmem>>, %arg10: memref<1x1xf32, #tpu.memory_space<vmem>>, %arg11: memref<1x32xf32, #tpu.memory_space<vmem>>, %arg12: memref<1x32xf32, #tpu.memory_space<vmem>>, %arg13: memref<32x6xf32, #tpu.memory_space<vmem>>, %arg14: memref<1x1xf32, #tpu.memory_space<vmem>>, %arg15: memref<1x6xf32, #tpu.memory_space<vmem>>) attributes {dimension_semantics = [], scalar_prefetch = 0 : i64, scratch_operands = 0 : i64, tpu.core_type = #tpu.core_type<tc>} {
    %c0 = arith.constant 0 : index
    %c0_0 = arith.constant 0 : index
    %0 = vector.load %arg0[%c0, %c0_0] : memref<32x32xbf16, #tpu.memory_space<vmem>>, vector<32x32xbf16>
    %c0_1 = arith.constant 0 : index
    %c0_2 = arith.constant 0 : index
    %1 = vector.load %arg1[%c0_1, %c0_2] : memref<32x32xbf16, #tpu.memory_space<vmem>>, vector<32x32xbf16>
    %cst = arith.constant dense<0.000000e+00> : vector<32x32xf32>
    %2 = tpu.matmul %0, %1, %cst {dimension_numbers = #tpu.dot_dimension_numbers<[1], [0], [0], [1], [0, 0, 1, 1], [], []>} : vector<32x32xbf16>, vector<32x32xbf16>, vector<32x32xf32> -> vector<32x32xf32>
    %c0_3 = arith.constant 0 : index
    %c0_4 = arith.constant 0 : index
    %3 = vector.load %arg2[%c0_3, %c0_4] : memref<256x32xbf16, #tpu.memory_space<vmem>>, vector<256x32xbf16>
    %4 = arith.truncf %2 : vector<32x32xf32> to vector<32x32xbf16>
    %cst_5 = arith.constant dense<0.000000e+00> : vector<256x32xf32>
    %5 = tpu.matmul %3, %4, %cst_5 {dimension_numbers = #tpu.dot_dimension_numbers<[1], [0], [0], [1], [0, 0, 1, 1], [], []>} : vector<256x32xbf16>, vector<32x32xbf16>, vector<256x32xf32> -> vector<256x32xf32>
    %c0_6 = arith.constant 0 : index
    %c0_7 = arith.constant 0 : index
    %6 = vector.load %arg3[%c0_6, %c0_7] : memref<256x1xf32, #tpu.memory_space<vmem>>, vector<256x1xf32>
    %7 = vector.broadcast %6 : vector<256x1xf32> to vector<256x32xf32>
    %8 = arith.addf %5, %7 : vector<256x32xf32>
    %cst_8 = arith.constant 0.000000e+00 : f32
    %9 = vector.broadcast %cst_8 : f32 to vector<256x32xf32>
    %10 = arith.maximumf %8, %9 : vector<256x32xf32>
    %c0_9 = arith.constant 0 : index
    %c0_10 = arith.constant 0 : index
    %11 = vector.load %arg4[%c0_9, %c0_10] : memref<1x256xbf16, #tpu.memory_space<vmem>>, vector<1x256xbf16>
    %12 = arith.truncf %10 : vector<256x32xf32> to vector<256x32xbf16>
    %cst_11 = arith.constant dense<0.000000e+00> : vector<1x32xf32>
    %13 = tpu.matmul %11, %12, %cst_11 {dimension_numbers = #tpu.dot_dimension_numbers<[1], [0], [0], [1], [0, 0, 1, 1], [], []>} : vector<1x256xbf16>, vector<256x32xbf16>, vector<1x32xf32> -> vector<1x32xf32>
    %14 = arith.truncf %13 : vector<1x32xf32> to vector<1x32xbf16>
    %cst_12 = arith.constant dense<0.000000e+00> : vector<1x32xf32>
    %15 = tpu.matmul %14, %1, %cst_12 {dimension_numbers = #tpu.dot_dimension_numbers<[1], [0], [0], [1], [0, 0, 1, 1], [], []>} : vector<1x32xbf16>, vector<32x32xbf16>, vector<1x32xf32> -> vector<1x32xf32>
    %c0_13 = arith.constant 0 : index
    %c0_14 = arith.constant 0 : index
    %16 = vector.load %arg5[%c0_13, %c0_14] : memref<1x1xf32, #tpu.memory_space<vmem>>, vector<1x1xf32>
    %17 = vector.broadcast %16 : vector<1x1xf32> to vector<1x32xf32>
    %18 = arith.addf %15, %17 : vector<1x32xf32>
    %c0_15 = arith.constant 0 : index
    %c0_16 = arith.constant 0 : index
    %19 = vector.load %arg6[%c0_15, %c0_16] : memref<32x32xf32, #tpu.memory_space<vmem>>, vector<32x32xf32>
    %c0_17 = arith.constant 0 : index
    %c0_18 = arith.constant 0 : index
    %20 = vector.load %arg7[%c0_17, %c0_18] : memref<1x32xf32, #tpu.memory_space<vmem>>, vector<1x32xf32>
    %c0_19 = arith.constant 0 : index
    %c0_20 = arith.constant 0 : index
    %21 = vector.load %arg8[%c0_19, %c0_20] : memref<1x32xf32, #tpu.memory_space<vmem>>, vector<1x32xf32>
    %cst_21 = arith.constant dense<0.000000e+00> : vector<1x32xf32>
    %22 = tpu.matmul %18, %19, %cst_21 {dimension_numbers = #tpu.dot_dimension_numbers<[1], [0], [0], [1], [0, 0, 1, 1], [], []>} : vector<1x32xf32>, vector<32x32xf32>, vector<1x32xf32> -> vector<1x32xf32>
    %23 = arith.subf %18, %22 : vector<1x32xf32>
    %24 = arith.mulf %23, %23 : vector<1x32xf32>
    %cst_22 = arith.constant dense<0.000000e+00> : vector<1x32xf32>
    %25 = tpu.matmul %24, %19, %cst_22 {dimension_numbers = #tpu.dot_dimension_numbers<[1], [0], [0], [1], [0, 0, 1, 1], [], []>} : vector<1x32xf32>, vector<32x32xf32>, vector<1x32xf32> -> vector<1x32xf32>
    %cst_23 = arith.constant 9.99999974E-6 : f32
    %26 = vector.broadcast %cst_23 : f32 to vector<1x32xf32>
    %27 = arith.addf %25, %26 : vector<1x32xf32>
    %28 = math.rsqrt %27 : vector<1x32xf32>
    %29 = arith.mulf %23, %28 : vector<1x32xf32>
    %30 = arith.mulf %29, %20 : vector<1x32xf32>
    %31 = arith.addf %30, %21 : vector<1x32xf32>
    %c0_24 = arith.constant 0 : index
    %c0_25 = arith.constant 0 : index
    %32 = vector.load %arg9[%c0_24, %c0_25] : memref<1x1xf32, #tpu.memory_space<vmem>>, vector<1x1xf32>
    %33 = vector.broadcast %32 : vector<1x1xf32> to vector<1x32xf32>
    %34 = arith.mulf %31, %33 : vector<1x32xf32>
    %c0_26 = arith.constant 0 : index
    %c0_27 = arith.constant 0 : index
    %35 = vector.load %arg10[%c0_26, %c0_27] : memref<1x1xf32, #tpu.memory_space<vmem>>, vector<1x1xf32>
    %36 = vector.broadcast %35 : vector<1x1xf32> to vector<1x32xf32>
    %37 = arith.addf %34, %36 : vector<1x32xf32>
    %c0_28 = arith.constant 0 : index
    %c0_29 = arith.constant 0 : index
    %38 = vector.load %arg11[%c0_28, %c0_29] : memref<1x32xf32, #tpu.memory_space<vmem>>, vector<1x32xf32>
    %c0_30 = arith.constant 0 : index
    %c0_31 = arith.constant 0 : index
    %39 = vector.load %arg12[%c0_30, %c0_31] : memref<1x32xf32, #tpu.memory_space<vmem>>, vector<1x32xf32>
    %cst_32 = arith.constant dense<0.000000e+00> : vector<1x32xf32>
    %40 = tpu.matmul %37, %19, %cst_32 {dimension_numbers = #tpu.dot_dimension_numbers<[1], [0], [0], [1], [0, 0, 1, 1], [], []>} : vector<1x32xf32>, vector<32x32xf32>, vector<1x32xf32> -> vector<1x32xf32>
    %41 = arith.subf %37, %40 : vector<1x32xf32>
    %42 = arith.mulf %41, %41 : vector<1x32xf32>
    %cst_33 = arith.constant dense<0.000000e+00> : vector<1x32xf32>
    %43 = tpu.matmul %42, %19, %cst_33 {dimension_numbers = #tpu.dot_dimension_numbers<[1], [0], [0], [1], [0, 0, 1, 1], [], []>} : vector<1x32xf32>, vector<32x32xf32>, vector<1x32xf32> -> vector<1x32xf32>
    %cst_34 = arith.constant 9.99999974E-6 : f32
    %44 = vector.broadcast %cst_34 : f32 to vector<1x32xf32>
    %45 = arith.addf %43, %44 : vector<1x32xf32>
    %46 = math.rsqrt %45 : vector<1x32xf32>
    %47 = arith.mulf %41, %46 : vector<1x32xf32>
    %48 = arith.mulf %47, %38 : vector<1x32xf32>
    %49 = arith.addf %48, %39 : vector<1x32xf32>
    %c0_35 = arith.constant 0 : index
    %c0_36 = arith.constant 0 : index
    %50 = vector.load %arg13[%c0_35, %c0_36] : memref<32x6xf32, #tpu.memory_space<vmem>>, vector<32x6xf32>
    %cst_37 = arith.constant dense<0.000000e+00> : vector<1x6xf32>
    %51 = tpu.matmul %49, %50, %cst_37 {dimension_numbers = #tpu.dot_dimension_numbers<[1], [0], [0], [1], [0, 0, 1, 1], [], []>} : vector<1x32xf32>, vector<32x6xf32>, vector<1x6xf32> -> vector<1x6xf32>
    %c0_38 = arith.constant 0 : index
    %c0_39 = arith.constant 0 : index
    %52 = vector.load %arg14[%c0_38, %c0_39] : memref<1x1xf32, #tpu.memory_space<vmem>>, vector<1x1xf32>
    %53 = vector.broadcast %52 : vector<1x1xf32> to vector<1x6xf32>
    %54 = arith.addf %51, %53 : vector<1x6xf32>
    %c0_40 = arith.constant 0 : index
    %c0_41 = arith.constant 0 : index
    %55 = vector.load %arg15[%c0_40, %c0_41] : memref<1x6xf32, #tpu.memory_space<vmem>>, vector<1x6xf32>
    tpu.vector_store %arg15[%c0_40, %c0_41], %54 {strides = array<i32>} : memref<1x6xf32, #tpu.memory_space<vmem>>, vector<1x6xf32>,
    return
  }
}

</mosaic_0001>

<llo_original>
// kernel: _lambda_.1
$region0: #{_lambda_.1}
  #allocation0 [shape = 'u32[]', space=smem, size = 0x4, offset = 0x4, fixed_abs, tag = 'smem constant byte address 0x4 - core index']
  #allocation1 [shape = 'u32[144,128]{1,0:T(1,128)}', space=vmem, size = 0x12000, scoped, tag = 'internal scratch']
  #allocation2 [shape = 'f32[1,1]{1,0:T(1,128)S(1)}', space=vmem, size = 0x200, scoped, tag = 'scoped memory for _lambda_.1']
  #allocation3 [shape = 'f32[1,1]{1,0:T(1,128)S(1)}', space=vmem, size = 0x200, scoped, tag = 'scoped memory for _lambda_.1']
  #allocation4 [shape = 'f32[1,1]{1,0:T(1,128)S(1)}', space=vmem, size = 0x200, scoped, tag = 'scoped memory for _lambda_.1']
  #allocation5 [shape = 'f32[1,1]{1,0:T(1,128)S(1)}', space=vmem, size = 0x200, scoped, tag = 'scoped memory for _lambda_.1']
  %s0 = inlined_call_operand.vmem [shape: bf16[32,32], index: 0, kind: input, shape index: {}]
  %s1 = inlined_call_operand.vmem [shape: bf16[32,32], index: 1, kind: input, shape index: {}]
  %s2 = inlined_call_operand.vmem [shape: bf16[256,32], index: 2, kind: input, shape index: {}]
  %s3 = inlined_call_operand.vmem [shape: f32[256,1], index: 3, kind: input, shape index: {}]
  %s4 = inlined_call_operand.vmem [shape: bf16[1,256], index: 4, kind: input, shape index: {}]
  %s5 = inlined_call_operand.<no memory space> [shape: f32[1,1], index: 5, kind: input, shape index: {}]
  %s6 = inlined_call_operand.vmem [shape: f32[32,32], index: 6, kind: input, shape index: {}]
  %s7 = inlined_call_operand.vmem [shape: f32[1,32], index: 7, kind: input, shape index: {}]
  %s8 = inlined_call_operand.vmem [shape: f32[1,32], index: 8, kind: input, shape index: {}]
  %s9 = inlined_call_operand.<no memory space> [shape: f32[1,1], index: 9, kind: input, shape index: {}]
  %s10 = inlined_call_operand.<no memory space> [shape: f32[1,1], index: 10, kind: input, shape index: {}]
  %s11 = inlined_call_operand.vmem [shape: f32[1,32], index: 11, kind: input, shape index: {}]
  %s12 = inlined_call_operand.vmem [shape: f32[1,32], index: 12, kind: input, shape index: {}]
  %s13 = inlined_call_operand.vmem [shape: f32[32,6], index: 13, kind: input, shape index: {}]
  %s14 = inlined_call_operand.<no memory space> [shape: f32[1,1], index: 14, kind: input, shape index: {}]
  %s15 = inlined_call_operand.vmem [shape: f32[1,6], index: 15, kind: output, shape index: {}]
  %s16 = sld [smem:[#allocation0]]
  $region70: #{_lambda_.1} parent=0
    _
  %s18 = ssub.s32 1, %s16
  %s19 = scalar_select 0, %s18, %s16
  %v20 = vstv %s5
  %21 = vst [vmem:[#allocation2] sm:$0x1] %v20
  %v22 = vstv %s9
  %23 = vst [vmem:[#allocation3] sm:$0x1] %v22
  %v24 = vstv %s10
  %25 = vst [vmem:[#allocation4] sm:$0x1] %v24
  %v26 = vstv %s14
  %27 = vst [vmem:[#allocation5] sm:$0x1] %v26
  // Predicated region
  $region2: #{_lambda_.1} parent=0 // pred_check
    _
  $region3: #{_lambda_.1} parent=0 // pred_check_branch
    %29 = sbr.rel (0) target = $region5
  $region4: #{_lambda_.1} parent=0 // pred_region
    _
  $region5: #{_lambda_.1} parent=0 // pred_fallthru
    _
  // Predicated region
  $region6: #{_lambda_.1} parent=0 // pred_check
    _
  $region7: #{_lambda_.1} parent=0 // pred_check_branch
    %31 = sbr.rel (0) target = $region9
  $region8: #{_lambda_.1} parent=0 // pred_region
    _
  $region9: #{_lambda_.1} parent=0 // pred_fallthru
    _
  // Predicated region
  $region10: #{_lambda_.1} parent=0 // pred_check
    _
  $region11: #{_lambda_.1} parent=0 // pred_check_branch
    %33 = sbr.rel (0) target = $region13
  $region12: #{_lambda_.1} parent=0 // pred_region
    _
  $region13: #{_lambda_.1} parent=0 // pred_fallthru
    _
  // Predicated region
  $region14: #{_lambda_.1} parent=0 // pred_check
    _
  $region15: #{_lambda_.1} parent=0 // pred_check_branch
    %35 = sbr.rel (0) target = $region17
  $region16: #{_lambda_.1} parent=0 // pred_region
    _
  $region17: #{_lambda_.1} parent=0 // pred_fallthru
    _
  // Predicated region
  $region18: #{_lambda_.1} parent=0 // pred_check
    _
  $region19: #{_lambda_.1} parent=0 // pred_check_branch
    %37 = sbr.rel (0) target = $region21
  $region20: #{_lambda_.1} parent=0 // pred_region
    _
  $region21: #{_lambda_.1} parent=0 // pred_fallthru
    _
  // Predicated region
  $region22: #{_lambda_.1} parent=0 // pred_check
    _
  $region23: #{_lambda_.1} parent=0 // pred_check_branch
    %39 = sbr.rel (0) target = $region25
  $region24: #{_lambda_.1} parent=0 // pred_region
    _
  $region25: #{_lambda_.1} parent=0 // pred_fallthru
    _
  // Predicated region
  $region26: #{_lambda_.1} parent=0 // pred_check
    _
  $region27: #{_lambda_.1} parent=0 // pred_check_branch
    %41 = sbr.rel (0) target = $region29
  $region28: #{_lambda_.1} parent=0 // pred_region
    _
  $region29: #{_lambda_.1} parent=0 // pred_fallthru
    _
  // Predicated region
  $region30: #{_lambda_.1} parent=0 // pred_check
    _
  $region31: #{_lambda_.1} parent=0 // pred_check_branch
    %43 = sbr.rel (0) target = $region33
  $region32: #{_lambda_.1} parent=0 // pred_region
    _
  $region33: #{_lambda_.1} parent=0 // pred_fallthru
    _
  // Predicated region
  $region34: #{_lambda_.1} parent=0 // pred_check
    _
  $region35: #{_lambda_.1} parent=0 // pred_check_branch
    %45 = sbr.rel (0) target = $region37
  $region36: #{_lambda_.1} parent=0 // pred_region
    _
  $region37: #{_lambda_.1} parent=0 // pred_fallthru
    _
  // Predicated region
  $region38: #{_lambda_.1} parent=0 // pred_check
    _
  $region39: #{_lambda_.1} parent=0 // pred_check_branch
    %47 = sbr.rel (0) target = $region41
  $region40: #{_lambda_.1} parent=0 // pred_region
    _
  $region41: #{_lambda_.1} parent=0 // pred_fallthru
    _
  // Predicated region
  $region42: #{_lambda_.1} parent=0 // pred_check
    _
  $region43: #{_lambda_.1} parent=0 // pred_check_branch
    %49 = sbr.rel (0) target = $region45
  $region44: #{_lambda_.1} parent=0 // pred_region
    _
  $region45: #{_lambda_.1} parent=0 // pred_fallthru
    _
  // Predicated region
  $region46: #{_lambda_.1} parent=0 // pred_check
    _
  $region47: #{_lambda_.1} parent=0 // pred_check_branch
    %51 = sbr.rel (0) target = $region49
  $region48: #{_lambda_.1} parent=0 // pred_region
    _
  $region49: #{_lambda_.1} parent=0 // pred_fallthru
    _
  // Predicated region
  $region50: #{_lambda_.1} parent=0 // pred_check
    _
  $region51: #{_lambda_.1} parent=0 // pred_check_branch
    %53 = sbr.rel (0) target = $region53
  $region52: #{_lambda_.1} parent=0 // pred_region
    _
  $region53: #{_lambda_.1} parent=0 // pred_fallthru
    _
  // Predicated region
  $region54: #{_lambda_.1} parent=0 // pred_check
    _
  $region55: #{_lambda_.1} parent=0 // pred_check_branch
    %55 = sbr.rel (0) target = $region57
  $region56: #{_lambda_.1} parent=0 // pred_region
    _
  $region57: #{_lambda_.1} parent=0 // pred_fallthru
    _
  // Predicated region
  $region58: #{_lambda_.1} parent=0 // pred_check
    _
  $region59: #{_lambda_.1} parent=0 // pred_check_branch
    %57 = sbr.rel (0) target = $region61
  $region60: #{_lambda_.1} parent=0 // pred_region
    _
  $region61: #{_lambda_.1} parent=0 // pred_fallthru
    _
  %v59 = vld [vmem:[%s0] sm:$0xf]
  %v60 = vld [vmem:[%s0 + $0x4] sm:$0xf]
  %v61 = vld [vmem:[%s0 + $0x8] sm:$0xf]
  %v62 = vld [vmem:[%s0 + $0xc] sm:$0xf]
  %v63 = vld [vmem:[%s1] sm:$0xf]
  %v64 = vld [vmem:[%s1 + $0x4] sm:$0xf]
  %v65 = vld [vmem:[%s1 + $0x8] sm:$0xf]
  %v66 = vld [vmem:[%s1 + $0xc] sm:$0xf]
  %v71 = vunpack.c.l.b16 %v59
  %v72 = vunpack.c.l.b16 %v60
  %v73 = vunpack.c.l.b16 %v61
  %v74 = vunpack.c.l.b16 %v62
  %v75 = vpack.c.b16 %v72, %v71
  %v76 = vpack.c.b16 %v74, %v73
  %v81 = vunpack.c.l.b16 %v63
  %v82 = vunpack.c.l.b16 %v64
  %v83 = vunpack.c.l.b16 %v65
  %v84 = vunpack.c.l.b16 %v66
  %v85 = vpack.c.b16 %v82, %v81
  %v86 = vpack.c.b16 %v84, %v83
  %vm89 = vcmask 261120
  %v91 = vsel %vm89, %v75, 0
  %v94 = vsel %vm89, %v76, 0
  %96 = vmatprep.subr.bf16.mxu0 0
  %97 = vmatpush1.bf16.msra.mxu0 0
  %98 = vmatprep.subr.bf16.mxu0 0
  %99 = vmatpush1.bf16.msra.mxu0 0
  %100 = vmatprep.subr.bf16.mxu0 0
  %101 = vmatpush1.bf16.msra.mxu0 0
  %102 = vmatprep.subr.bf16.mxu0 0
  %103 = vmatpush1.bf16.msra.mxu0 0
  %104 = vmatprep.subr.bf16.mxu0 0
  %105 = vmatpush1.bf16.msra.mxu0 0
  %106 = vmatprep.subr.bf16.mxu0 0
  %107 = vmatpush1.bf16.msra.mxu0 0
  %108 = vmatprep.subr.bf16.mxu0 0
  %109 = vmatpush1.bf16.msra.mxu0 %v86
  %110 = vmatprep.subr.bf16.mxu0 0
  %111 = vmatpush1.bf16.msra.mxu0 %v85
  %112 = vmatprep.subr.bf16.mxu0 0
  %113 = vmatpush2.bf16.msra.mxu0 0
  %114 = vmatprep.subr.bf16.mxu0 0
  %115 = vmatpush2.bf16.msra.mxu0 0
  %116 = vmatprep.subr.bf16.mxu0 0
  %117 = vmatpush2.bf16.msra.mxu0 0
  %118 = vmatprep.subr.bf16.mxu0 0
  %119 = vmatpush2.bf16.msra.mxu0 0
  %120 = vmatprep.subr.bf16.mxu0 0
  %121 = vmatpush2.bf16.msra.mxu0 0
  %122 = vmatprep.subr.bf16.mxu0 0
  %123 = vmatpush2.bf16.msra.mxu0 0
  %124 = vmatprep.subr.bf16.mxu0 0
  %125 = vmatpush2.bf16.msra.mxu0 0
  %126 = vmatprep.subr.bf16.mxu0 0
  %127 = vmatpush2.bf16.msra.mxu0 0
  %128 = vmatprep.mubr.bf16.mxu0 0
  %129 = vmatmul.mubr.bf16.gmra.mxu0 %v91
  %v130 = vpop.f32.mrf.mxu0
  %v131 = vadd.f32 0.0, %v130
  %v132 = vpop.f32.mrf.mxu0
  %v133 = vpop.f32.mrf.mxu0
  %v134 = vadd.f32 0.0, %v133
  %v135 = vpop.f32.mrf.mxu0
  %136 = vmatprep.mubr.bf16.mxu0 0
  %137 = vmatmul.mubr.bf16.gmra.mxu0 %v94
  %v138 = vpop.f32.mrf.mxu0
  %v139 = vadd.f32 0.0, %v138
  %v140 = vpop.f32.mrf.mxu0
  %v141 = vpop.f32.mrf.mxu0
  %v142 = vadd.f32 0.0, %v141
  %v143 = vpop.f32.mrf.mxu0
  %144 = vdwg.mxu0
  %v145 = vld [vmem:[%s2] sm:$0xf]
  %v146 = vld [vmem:[%s2 + $0x4] sm:$0xf]
  %v147 = vld [vmem:[%s2 + $0x8] sm:$0xf]
  %v148 = vld [vmem:[%s2 + $0xc] sm:$0xf]
  %v149 = vld [vmem:[%s2 + $0x10] sm:$0xf]
  %v150 = vld [vmem:[%s2 + $0x14] sm:$0xf]
  %v151 = vld [vmem:[%s2 + $0x18] sm:$0xf]
  %v152 = vld [vmem:[%s2 + $0x1c] sm:$0xf]
  %v153 = vld [vmem:[%s2 + $0x20] sm:$0xf]
  %v154 = vld [vmem:[%s2 + $0x24] sm:$0xf]
  %v155 = vld [vmem:[%s2 + $0x28] sm:$0xf]
  %v156 = vld [vmem:[%s2 + $0x2c] sm:$0xf]
  %v157 = vld [vmem:[%s2 + $0x30] sm:$0xf]
  %v158 = vld [vmem:[%s2 + $0x34] sm:$0xf]
  %v159 = vld [vmem:[%s2 + $0x38] sm:$0xf]
  %v160 = vld [vmem:[%s2 + $0x3c] sm:$0xf]
  %v161 = vld [vmem:[%s2 + $0x40] sm:$0xf]
  %v162 = vld [vmem:[%s2 + $0x44] sm:$0xf]
  %v163 = vld [vmem:[%s2 + $0x48] sm:$0xf]
  %v164 = vld [vmem:[%s2 + $0x4c] sm:$0xf]
  %v165 = vld [vmem:[%s2 + $0x50] sm:$0xf]
  %v166 = vld [vmem:[%s2 + $0x54] sm:$0xf]
  %v167 = vld [vmem:[%s2 + $0x58] sm:$0xf]
  %v168 = vld [vmem:[%s2 + $0x5c] sm:$0xf]
  %v169 = vld [vmem:[%s2 + $0x60] sm:$0xf]
  %v170 = vld [vmem:[%s2 + $0x64] sm:$0xf]
  %v171 = vld [vmem:[%s2 + $0x68] sm:$0xf]
  %v172 = vld [vmem:[%s2 + $0x6c] sm:$0xf]
  %v173 = vld [vmem:[%s2 + $0x70] sm:$0xf]
  %v174 = vld [vmem:[%s2 + $0x74] sm:$0xf]
  %v175 = vld [vmem:[%s2 + $0x78] sm:$0xf]
  %v176 = vld [vmem:[%s2 + $0x7c] sm:$0xf]
  %v177 = vpack.c.bf16 %v134, %v131
  %v178 = vpack.c.bf16 %v142, %v139
  %v179 = vld [vmem:[%s3] sm:$0xff]
  %v180 = vld [vmem:[%s3 + $0x8] sm:$0xff]
  %v181 = vld [vmem:[%s3 + $0x10] sm:$0xff]
  %v182 = vld [vmem:[%s3 + $0x18] sm:$0xff]
  %v183 = vld [vmem:[%s3 + $0x20] sm:$0xff]
  %v184 = vld [vmem:[%s3 + $0x28] sm:$0xff]
  %v185 = vld [vmem:[%s3 + $0x30] sm:$0xff]
  %v186 = vld [vmem:[%s3 + $0x38] sm:$0xff]
  %v187 = vld [vmem:[%s3 + $0x40] sm:$0xff]
  %v188 = vld [vmem:[%s3 + $0x48] sm:$0xff]
  %v189 = vld [vmem:[%s3 + $0x50] sm:$0xff]
  %v190 = vld [vmem:[%s3 + $0x58] sm:$0xff]
  %v191 = vld [vmem:[%s3 + $0x60] sm:$0xff]
  %v192 = vld [vmem:[%s3 + $0x68] sm:$0xff]
  %v193 = vld [vmem:[%s3 + $0x70] sm:$0xff]
  %v194 = vld [vmem:[%s3 + $0x78] sm:$0xff]
  %v195 = vld [vmem:[%s3 + $0x80] sm:$0xff]
  %v196 = vld [vmem:[%s3 + $0x88] sm:$0xff]
  %v197 = vld [vmem:[%s3 + $0x90] sm:$0xff]
  %v198 = vld [vmem:[%s3 + $0x98] sm:$0xff]
  %v199 = vld [vmem:[%s3 + $0xa0] sm:$0xff]
  %v200 = vld [vmem:[%s3 + $0xa8] sm:$0xff]
  %v201 = vld [vmem:[%s3 + $0xb0] sm:$0xff]
  %v202 = vld [vmem:[%s3 + $0xb8] sm:$0xff]
  %v203 = vld [vmem:[%s3 + $0xc0] sm:$0xff]
  %v204 = vld [vmem:[%s3 + $0xc8] sm:$0xff]
  %v205 = vld [vmem:[%s3 + $0xd0] sm:$0xff]
  %v206 = vld [vmem:[%s3 + $0xd8] sm:$0xff]
  %v207 = vld [vmem:[%s3 + $0xe0] sm:$0xff]
  %v208 = vld [vmem:[%s3 + $0xe8] sm:$0xff]
  %v209 = vld [vmem:[%s3 + $0xf0] sm:$0xff]
  %v210 = vld [vmem:[%s3 + $0xf8] sm:$0xff]
  %212 = vset.pattern.permute.xlu0 0
  %213 = vperm.xlu0 %212, %v179
  %v214 = vpop.permute.xlu0 %213
  %217 = vset.pattern.permute.xlu0 0
  %218 = vperm.xlu0 %217, %v180
  %v219 = vpop.permute.xlu0 %218
  %222 = vset.pattern.permute.xlu0 0
  %223 = vperm.xlu0 %222, %v181
  %v224 = vpop.permute.xlu0 %223
  %227 = vset.pattern.permute.xlu0 0
  %228 = vperm.xlu0 %227, %v182
  %v229 = vpop.permute.xlu0 %228
  %232 = vset.pattern.permute.xlu0 0
  %233 = vperm.xlu0 %232, %v183
  %v234 = vpop.permute.xlu0 %233
  %237 = vset.pattern.permute.xlu0 0
  %238 = vperm.xlu0 %237, %v184
  %v239 = vpop.permute.xlu0 %238
  %242 = vset.pattern.permute.xlu0 0
  %243 = vperm.xlu0 %242, %v185
  %v244 = vpop.permute.xlu0 %243
  %247 = vset.pattern.permute.xlu0 0
  %248 = vperm.xlu0 %247, %v186
  %v249 = vpop.permute.xlu0 %248
  %252 = vset.pattern.permute.xlu0 0
  %253 = vperm.xlu0 %252, %v187
  %v254 = vpop.permute.xlu0 %253
  %257 = vset.pattern.permute.xlu0 0
  %258 = vperm.xlu0 %257, %v188
  %v259 = vpop.permute.xlu0 %258
  %262 = vset.pattern.permute.xlu0 0
  %263 = vperm.xlu0 %262, %v189
  %v264 = vpop.permute.xlu0 %263
  %267 = vset.pattern.permute.xlu0 0
  %268 = vperm.xlu0 %267, %v190
  %v269 = vpop.permute.xlu0 %268
  %272 = vset.pattern.permute.xlu0 0
  %273 = vperm.xlu0 %272, %v191
  %v274 = vpop.permute.xlu0 %273
  %277 = vset.pattern.permute.xlu0 0
  %278 = vperm.xlu0 %277, %v192
  %v279 = vpop.permute.xlu0 %278
  %282 = vset.pattern.permute.xlu0 0
  %283 = vperm.xlu0 %282, %v193
  %v284 = vpop.permute.xlu0 %283
  %287 = vset.pattern.permute.xlu0 0
  %288 = vperm.xlu0 %287, %v194
  %v289 = vpop.permute.xlu0 %288
  %292 = vset.pattern.permute.xlu0 0
  %293 = vperm.xlu0 %292, %v195
  %v294 = vpop.permute.xlu0 %293
  %297 = vset.pattern.permute.xlu0 0
  %298 = vperm.xlu0 %297, %v196
  %v299 = vpop.permute.xlu0 %298
  %302 = vset.pattern.permute.xlu0 0
  %303 = vperm.xlu0 %302, %v197
  %v304 = vpop.permute.xlu0 %303
  %307 = vset.pattern.permute.xlu0 0
  %308 = vperm.xlu0 %307, %v198
  %v309 = vpop.permute.xlu0 %308
  %312 = vset.pattern.permute.xlu0 0
  %313 = vperm.xlu0 %312, %v199
  %v314 = vpop.permute.xlu0 %313
  %317 = vset.pattern.permute.xlu0 0
  %318 = vperm.xlu0 %317, %v200
  %v319 = vpop.permute.xlu0 %318
  %322 = vset.pattern.permute.xlu0 0
  %323 = vperm.xlu0 %322, %v201
  %v324 = vpop.permute.xlu0 %323
  %327 = vset.pattern.permute.xlu0 0
  %328 = vperm.xlu0 %327, %v202
  %v329 = vpop.permute.xlu0 %328
  %332 = vset.pattern.permute.xlu0 0
  %333 = vperm.xlu0 %332, %v203
  %v334 = vpop.permute.xlu0 %333
  %337 = vset.pattern.permute.xlu0 0
  %338 = vperm.xlu0 %337, %v204
  %v339 = vpop.permute.xlu0 %338
  %342 = vset.pattern.permute.xlu0 0
  %343 = vperm.xlu0 %342, %v205
  %v344 = vpop.permute.xlu0 %343
  %347 = vset.pattern.permute.xlu0 0
  %348 = vperm.xlu0 %347, %v206
  %v349 = vpop.permute.xlu0 %348
  %352 = vset.pattern.permute.xlu0 0
  %353 = vperm.xlu0 %352, %v207
  %v354 = vpop.permute.xlu0 %353
  %357 = vset.pattern.permute.xlu0 0
  %358 = vperm.xlu0 %357, %v208
  %v359 = vpop.permute.xlu0 %358
  %362 = vset.pattern.permute.xlu0 0
  %363 = vperm.xlu0 %362, %v209
  %v364 = vpop.permute.xlu0 %363
  %367 = vset.pattern.permute.xlu0 0
  %368 = vperm.xlu0 %367, %v210
  %v369 = vpop.permute.xlu0 %368
  %v403 = vunpack.c.l.b16 %v145
  %v404 = vunpack.c.l.b16 %v146
  %v405 = vunpack.c.l.b16 %v147
  %v406 = vunpack.c.l.b16 %v148
  %v407 = vunpack.c.l.b16 %v149
  %v408 = vunpack.c.l.b16 %v150
  %v409 = vunpack.c.l.b16 %v151
  %v410 = vunpack.c.l.b16 %v152
  %v411 = vunpack.c.l.b16 %v153
  %v412 = vunpack.c.l.b16 %v154
  %v413 = vunpack.c.l.b16 %v155
  %v414 = vunpack.c.l.b16 %v156
  %v415 = vunpack.c.l.b16 %v157
  %v416 = vunpack.c.l.b16 %v158
  %v417 = vunpack.c.l.b16 %v159
  %v418 = vunpack.c.l.b16 %v160
  %v419 = vunpack.c.l.b16 %v161
  %v420 = vunpack.c.l.b16 %v162
  %v421 = vunpack.c.l.b16 %v163
  %v422 = vunpack.c.l.b16 %v164
  %v423 = vunpack.c.l.b16 %v165
  %v424 = vunpack.c.l.b16 %v166
  %v425 = vunpack.c.l.b16 %v167
  %v426 = vunpack.c.l.b16 %v168
  %v427 = vunpack.c.l.b16 %v169
  %v428 = vunpack.c.l.b16 %v170
  %v429 = vunpack.c.l.b16 %v171
  %v430 = vunpack.c.l.b16 %v172
  %v431 = vunpack.c.l.b16 %v173
  %v432 = vunpack.c.l.b16 %v174
  %v433 = vunpack.c.l.b16 %v175
  %v434 = vunpack.c.l.b16 %v176
  %v435 = vpack.c.b16 %v404, %v403
  %v436 = vpack.c.b16 %v406, %v405
  %v437 = vpack.c.b16 %v408, %v407
  %v438 = vpack.c.b16 %v410, %v409
  %v439 = vpack.c.b16 %v412, %v411
  %v440 = vpack.c.b16 %v414, %v413
  %v441 = vpack.c.b16 %v416, %v415
  %v442 = vpack.c.b16 %v418, %v417
  %v443 = vpack.c.b16 %v420, %v419
  %v444 = vpack.c.b16 %v422, %v421
  %v445 = vpack.c.b16 %v424, %v423
  %v446 = vpack.c.b16 %v426, %v425
  %v447 = vpack.c.b16 %v428, %v427
  %v448 = vpack.c.b16 %v430, %v429
  %v449 = vpack.c.b16 %v432, %v431
  %v450 = vpack.c.b16 %v434, %v433
  %v452 = vsel %vm89, %v435, 0
  %v455 = vsel %vm89, %v436, 0
  %v458 = vsel %vm89, %v437, 0
  %v461 = vsel %vm89, %v438, 0
  %v464 = vsel %vm89, %v439, 0
  %v467 = vsel %vm89, %v440, 0
  %v470 = vsel %vm89, %v441, 0
  %v473 = vsel %vm89, %v442, 0
  %v476 = vsel %vm89, %v443, 0
  %v479 = vsel %vm89, %v444, 0
  %v482 = vsel %vm89, %v445, 0
  %v485 = vsel %vm89, %v446, 0
  %v488 = vsel %vm89, %v447, 0
  %v491 = vsel %vm89, %v448, 0
  %v494 = vsel %vm89, %v449, 0
  %v497 = vsel %vm89, %v450, 0
  %499 = vmatprep.subr.bf16.mxu0 0
  %500 = vmatpush1.bf16.msra.mxu0 0
  %501 = vmatprep.subr.bf16.mxu0 0
  %502 = vmatpush1.bf16.msra.mxu0 0
  %503 = vmatprep.subr.bf16.mxu0 0
  %504 = vmatpush1.bf16.msra.mxu0 0
  %505 = vmatprep.subr.bf16.mxu0 0
  %506 = vmatpush1.bf16.msra.mxu0 0
  %507 = vmatprep.subr.bf16.mxu0 0
  %508 = vmatpush1.bf16.msra.mxu0 0
  %509 = vmatprep.subr.bf16.mxu0 0
  %510 = vmatpush1.bf16.msra.mxu0 0
  %511 = vmatprep.subr.bf16.mxu0 0
  %512 = vmatpush1.bf16.msra.mxu0 %v178
  %513 = vmatprep.subr.bf16.mxu0 0
  %514 = vmatpush1.bf16.msra.mxu0 %v177
  %515 = vmatprep.subr.bf16.mxu0 0
  %516 = vmatpush2.bf16.msra.mxu0 0
  %517 = vmatprep.subr.bf16.mxu0 0
  %518 = vmatpush2.bf16.msra.mxu0 0
  %519 = vmatprep.subr.bf16.mxu0 0
  %520 = vmatpush2.bf16.msra.mxu0 0
  %521 = vmatprep.subr.bf16.mxu0 0
  %522 = vmatpush2.bf16.msra.mxu0 0
  %523 = vmatprep.subr.bf16.mxu0 0
  %524 = vmatpush2.bf16.msra.mxu0 0
  %525 = vmatprep.subr.bf16.mxu0 0
  %526 = vmatpush2.bf16.msra.mxu0 0
  %527 = vmatprep.subr.bf16.mxu0 0
  %528 = vmatpush2.bf16.msra.mxu0 0
  %529 = vmatprep.subr.bf16.mxu0 0
  %530 = vmatpush2.bf16.msra.mxu0 0
  %531 = vmatprep.mubr.bf16.mxu0 0
  %532 = vmatmul.mubr.bf16.gmra.mxu0 %v452
  %v533 = vpop.f32.mrf.mxu0
  %v534 = vadd.f32 %v214, %v533
  %v535 = vpop.f32.mrf.mxu0
  %v536 = vpop.f32.mrf.mxu0
  %v537 = vadd.f32 %v219, %v536
  %v538 = vpop.f32.mrf.mxu0
  %539 = vmatprep.mubr.bf16.mxu0 0
  %540 = vmatmul.mubr.bf16.gmra.mxu0 %v455
  %v541 = vpop.f32.mrf.mxu0
  %v542 = vadd.f32 %v224, %v541
  %v543 = vpop.f32.mrf.mxu0
  %v544 = vpop.f32.mrf.mxu0
  %v545 = vadd.f32 %v229, %v544
  %v546 = vpop.f32.mrf.mxu0
  %547 = vmatprep.mubr.bf16.mxu0 0
  %548 = vmatmul.mubr.bf16.gmra.mxu0 %v458
  %v549 = vpop.f32.mrf.mxu0
  %v550 = vadd.f32 %v234, %v549
  %v551 = vpop.f32.mrf.mxu0
  %v552 = vpop.f32.mrf.mxu0
  %v553 = vadd.f32 %v239, %v552
  %v554 = vpop.f32.mrf.mxu0
  %555 = vmatprep.mubr.bf16.mxu0 0
  %556 = vmatmul.mubr.bf16.gmra.mxu0 %v461
  %v557 = vpop.f32.mrf.mxu0
  %v558 = vadd.f32 %v244, %v557
  %v559 = vpop.f32.mrf.mxu0
  %v560 = vpop.f32.mrf.mxu0
  %v561 = vadd.f32 %v249, %v560
  %v562 = vpop.f32.mrf.mxu0
  %563 = vmatprep.mubr.bf16.mxu0 0
  %564 = vmatmul.mubr.bf16.gmra.mxu0 %v464
  %v565 = vpop.f32.mrf.mxu0
  %v566 = vadd.f32 %v254, %v565
  %v567 = vpop.f32.mrf.mxu0
  %v568 = vpop.f32.mrf.mxu0
  %v569 = vadd.f32 %v259, %v568
  %v570 = vpop.f32.mrf.mxu0
  %571 = vmatprep.mubr.bf16.mxu0 0
  %572 = vmatmul.mubr.bf16.gmra.mxu0 %v467
  %v573 = vpop.f32.mrf.mxu0
  %v574 = vadd.f32 %v264, %v573
  %v575 = vpop.f32.mrf.mxu0
  %v576 = vpop.f32.mrf.mxu0
  %v577 = vadd.f32 %v269, %v576
  %v578 = vpop.f32.mrf.mxu0
  %579 = vmatprep.mubr.bf16.mxu0 0
  %580 = vmatmul.mubr.bf16.gmra.mxu0 %v470
  %v581 = vpop.f32.mrf.mxu0
  %v582 = vadd.f32 %v274, %v581
  %v583 = vpop.f32.mrf.mxu0
  %v584 = vpop.f32.mrf.mxu0
  %v585 = vadd.f32 %v279, %v584
  %v586 = vpop.f32.mrf.mxu0
  %587 = vmatprep.mubr.bf16.mxu0 0
  %588 = vmatmul.mubr.bf16.gmra.mxu0 %v473
  %v589 = vpop.f32.mrf.mxu0
  %v590 = vadd.f32 %v284, %v589
  %v591 = vpop.f32.mrf.mxu0
  %v592 = vpop.f32.mrf.mxu0
  %v593 = vadd.f32 %v289, %v592
  %v594 = vpop.f32.mrf.mxu0
  %595 = vmatprep.mubr.bf16.mxu0 0
  %596 = vmatmul.mubr.bf16.gmra.mxu0 %v476
  %v597 = vpop.f32.mrf.mxu0
  %v598 = vadd.f32 %v294, %v597
  %v599 = vpop.f32.mrf.mxu0
  %v600 = vpop.f32.mrf.mxu0
  %v601 = vadd.f32 %v299, %v600
  %v602 = vpop.f32.mrf.mxu0
  %603 = vmatprep.mubr.bf16.mxu0 0
  %604 = vmatmul.mubr.bf16.gmra.mxu0 %v479
  %v605 = vpop.f32.mrf.mxu0
  %v606 = vadd.f32 %v304, %v605
  %v607 = vpop.f32.mrf.mxu0
  %v608 = vpop.f32.mrf.mxu0
  %v609 = vadd.f32 %v309, %v608
  %v610 = vpop.f32.mrf.mxu0
  %611 = vmatprep.mubr.bf16.mxu0 0
  %612 = vmatmul.mubr.bf16.gmra.mxu0 %v482
  %v613 = vpop.f32.mrf.mxu0
  %v614 = vadd.f32 %v314, %v613
  %v615 = vpop.f32.mrf.mxu0
  %v616 = vpop.f32.mrf.mxu0
  %v617 = vadd.f32 %v319, %v616
  %v618 = vpop.f32.mrf.mxu0
  %619 = vmatprep.mubr.bf16.mxu0 0
  %620 = vmatmul.mubr.bf16.gmra.mxu0 %v485
  %v621 = vpop.f32.mrf.mxu0
  %v622 = vadd.f32 %v324, %v621
  %v623 = vpop.f32.mrf.mxu0
  %v624 = vpop.f32.mrf.mxu0
  %v625 = vadd.f32 %v329, %v624
  %v626 = vpop.f32.mrf.mxu0
  %627 = vmatprep.mubr.bf16.mxu0 0
  %628 = vmatmul.mubr.bf16.gmra.mxu0 %v488
  %v629 = vpop.f32.mrf.mxu0
  %v630 = vadd.f32 %v334, %v629
  %v631 = vpop.f32.mrf.mxu0
  %v632 = vpop.f32.mrf.mxu0
  %v633 = vadd.f32 %v339, %v632
  %v634 = vpop.f32.mrf.mxu0
  %635 = vmatprep.mubr.bf16.mxu0 0
  %636 = vmatmul.mubr.bf16.gmra.mxu0 %v491
  %v637 = vpop.f32.mrf.mxu0
  %v638 = vadd.f32 %v344, %v637
  %v639 = vpop.f32.mrf.mxu0
  %v640 = vpop.f32.mrf.mxu0
  %v641 = vadd.f32 %v349, %v640
  %v642 = vpop.f32.mrf.mxu0
  %643 = vmatprep.mubr.bf16.mxu0 0
  %644 = vmatmul.mubr.bf16.gmra.mxu0 %v494
  %v645 = vpop.f32.mrf.mxu0
  %v646 = vadd.f32 %v354, %v645
  %v647 = vpop.f32.mrf.mxu0
  %v648 = vpop.f32.mrf.mxu0
  %v649 = vadd.f32 %v359, %v648
  %v650 = vpop.f32.mrf.mxu0
  %651 = vmatprep.mubr.bf16.mxu0 0
  %652 = vmatmul.mubr.bf16.gmra.mxu0 %v497
  %v653 = vpop.f32.mrf.mxu0
  %v654 = vadd.f32 %v364, %v653
  %v655 = vpop.f32.mrf.mxu0
  %v656 = vpop.f32.mrf.mxu0
  %v657 = vadd.f32 %v369, %v656
  %v658 = vpop.f32.mrf.mxu0
  %659 = vdwg.mxu0
  %v660 = vmax.f32 %v534, 0.0
  %v661 = vmax.f32 %v537, 0.0
  %v662 = vmax.f32 %v542, 0.0
  %v663 = vmax.f32 %v545, 0.0
  %v664 = vmax.f32 %v550, 0.0
  %v665 = vmax.f32 %v553, 0.0
  %v666 = vmax.f32 %v558, 0.0
  %v667 = vmax.f32 %v561, 0.0
  %v668 = vmax.f32 %v566, 0.0
  %v669 = vmax.f32 %v569, 0.0
  %v670 = vmax.f32 %v574, 0.0
  %v671 = vmax.f32 %v577, 0.0
  %v672 = vmax.f32 %v582, 0.0
  %v673 = vmax.f32 %v585, 0.0
  %v674 = vmax.f32 %v590, 0.0
  %v675 = vmax.f32 %v593, 0.0
  %v676 = vmax.f32 %v598, 0.0
  %v677 = vmax.f32 %v601, 0.0
  %v678 = vmax.f32 %v606, 0.0
  %v679 = vmax.f32 %v609, 0.0
  %v680 = vmax.f32 %v614, 0.0
  %v681 = vmax.f32 %v617, 0.0
  %v682 = vmax.f32 %v622, 0.0
  %v683 = vmax.f32 %v625, 0.0
  %v684 = vmax.f32 %v630, 0.0
  %v685 = vmax.f32 %v633, 0.0
  %v686 = vmax.f32 %v638, 0.0
  %v687 = vmax.f32 %v641, 0.0
  %v688 = vmax.f32 %v646, 0.0
  %v689 = vmax.f32 %v649, 0.0
  %v690 = vmax.f32 %v654, 0.0
  %v691 = vmax.f32 %v657, 0.0
  %v692 = vld [vmem:[%s4] sm:$0x3]
  %v693 = vpack.c.bf16 %v661, %v660
  %v694 = vpack.c.bf16 %v663, %v662
  %v695 = vpack.c.bf16 %v665, %v664
  %v696 = vpack.c.bf16 %v667, %v666
  %v697 = vpack.c.bf16 %v669, %v668
  %v698 = vpack.c.bf16 %v671, %v670
  %v699 = vpack.c.bf16 %v673, %v672
  %v700 = vpack.c.bf16 %v675, %v674
  %v701 = vpack.c.bf16 %v677, %v676
  %v702 = vpack.c.bf16 %v679, %v678
  %v703 = vpack.c.bf16 %v681, %v680
  %v704 = vpack.c.bf16 %v683, %v682
  %v705 = vpack.c.bf16 %v685, %v684
  %v706 = vpack.c.bf16 %v687, %v686
  %v707 = vpack.c.bf16 %v689, %v688
  %v708 = vpack.c.bf16 %v691, %v690
  %v711 = vunpack.c.l.s4 1966171168
  %v712 = vunpack.c.0.s8 %v711
  %v713 = vlaneseq
  %v714 = vshrl.u32 %v713, 7
  %v715 = vsub.s32 %v712, %v714
  %v716 = vrot.slane %v692, %v715
  %v717 = vcombine.high %v716, %v716
  %v719 = vunpack.c.l.s4 1966171168
  %v720 = vunpack.c.0.s8 %v719
  %v721 = vlaneseq
  %v722 = vshrl.u32 %v721, 7
  %v723 = vsub.s32 %v720, %v722
  %v724 = vrot.slane %v716, %v723
  %v726 = vunpack.c.l.s4 1966171168
  %v727 = vunpack.c.0.s8 %v726
  %v728 = vlaneseq
  %v729 = vshrl.u32 %v728, 7
  %v730 = vsub.s32 %v727, %v729
  %v731 = vrot.slane %v717, %v730
  %734 = vmatprep.subr.bf16.mxu0 0
  %735 = vmatpush1.bf16.msra.mxu0 %v700
  %736 = vmatprep.subr.bf16.mxu0 0
  %737 = vmatpush1.bf16.msra.mxu0 %v699
  %738 = vmatprep.subr.bf16.mxu0 0
  %739 = vmatpush1.bf16.msra.mxu0 %v698
  %740 = vmatprep.subr.bf16.mxu0 0
  %741 = vmatpush1.bf16.msra.mxu0 %v697
  %742 = vmatprep.subr.bf16.mxu0 0
  %743 = vmatpush1.bf16.msra.mxu0 %v696
  %744 = vmatprep.subr.bf16.mxu0 0
  %745 = vmatpush1.bf16.msra.mxu0 %v695
  %746 = vmatprep.subr.bf16.mxu0 0
  %747 = vmatpush1.bf16.msra.mxu0 %v694
  %748 = vmatprep.subr.bf16.mxu0 0
  %749 = vmatpush1.bf16.msra.mxu0 %v693
  %750 = vmatprep.subr.bf16.mxu0 0
  %751 = vmatpush2.bf16.msra.mxu0 %v708
  %752 = vmatprep.subr.bf16.mxu0 0
  %753 = vmatpush2.bf16.msra.mxu0 %v707
  %754 = vmatprep.subr.bf16.mxu0 0
  %755 = vmatpush2.bf16.msra.mxu0 %v706
  %756 = vmatprep.subr.bf16.mxu0 0
  %757 = vmatpush2.bf16.msra.mxu0 %v705
  %758 = vmatprep.subr.bf16.mxu0 0
  %759 = vmatpush2.bf16.msra.mxu0 %v704
  %760 = vmatprep.subr.bf16.mxu0 0
  %761 = vmatpush2.bf16.msra.mxu0 %v703
  %762 = vmatprep.subr.bf16.mxu0 0
  %763 = vmatpush2.bf16.msra.mxu0 %v702
  %764 = vmatprep.subr.bf16.mxu0 0
  %765 = vmatpush2.bf16.msra.mxu0 %v701
  %766 = vmatprep.mubr.bf16.mxu0 %v731
  %767 = vmatmul.mubr.bf16.gmra.mxu0 %v724
  %v768 = vpop.f32.mrf.mxu0
  %v769 = vadd.f32 0.0, %v768
  %v770 = vpop.f32.mrf.mxu0
  %v771 = vpop.f32.mrf.mxu0
  %v772 = vpop.f32.mrf.mxu0
  %773 = vdwg.mxu0
  %v774 = vpack.c.bf16 %v769, %v769
  %v775 = vld [vmem:[#allocation2] sm:$0x1]
  %777 = vset.pattern.permute.xlu0 0
  %778 = vperm.xlu0 %777, %v775
  %v779 = vpop.permute.xlu0 %778
  %v781 = vlaneseq
  %v782 = vshrl.u32 %v781, 7
  %v783 = vsub.s32 0, %v782
  %v784 = vrot.slane %v779, %v783
  %v786 = vsel %vm89, %v774, 0
  %788 = vmatprep.subr.bf16.mxu0 0
  %789 = vmatpush1.bf16.msra.mxu0 0
  %790 = vmatprep.subr.bf16.mxu0 0
  %791 = vmatpush1.bf16.msra.mxu0 0
  %792 = vmatprep.subr.bf16.mxu0 0
  %793 = vmatpush1.bf16.msra.mxu0 0
  %794 = vmatprep.subr.bf16.mxu0 0
  %795 = vmatpush1.bf16.msra.mxu0 0
  %796 = vmatprep.subr.bf16.mxu0 0
  %797 = vmatpush1.bf16.msra.mxu0 0
  %798 = vmatprep.subr.bf16.mxu0 0
  %799 = vmatpush1.bf16.msra.mxu0 0
  %800 = vmatprep.subr.bf16.mxu0 0
  %801 = vmatpush1.bf16.msra.mxu0 %v86
  %802 = vmatprep.subr.bf16.mxu0 0
  %803 = vmatpush1.bf16.msra.mxu0 %v85
  %804 = vmatprep.subr.bf16.mxu0 0
  %805 = vmatpush2.bf16.msra.mxu0 0
  %806 = vmatprep.subr.bf16.mxu0 0
  %807 = vmatpush2.bf16.msra.mxu0 0
  %808 = vmatprep.subr.bf16.mxu0 0
  %809 = vmatpush2.bf16.msra.mxu0 0
  %810 = vmatprep.subr.bf16.mxu0 0
  %811 = vmatpush2.bf16.msra.mxu0 0
  %812 = vmatprep.subr.bf16.mxu0 0
  %813 = vmatpush2.bf16.msra.mxu0 0
  %814 = vmatprep.subr.bf16.mxu0 0
  %815 = vmatpush2.bf16.msra.mxu0 0
  %816 = vmatprep.subr.bf16.mxu0 0
  %817 = vmatpush2.bf16.msra.mxu0 0
  %818 = vmatprep.subr.bf16.mxu0 0
  %819 = vmatpush2.bf16.msra.mxu0 0
  %820 = vmatprep.mubr.bf16.mxu0 0
  %821 = vmatmul.mubr.bf16.gmra.mxu0 %v786
  %v822 = vpop.f32.mrf.mxu0
  %v823 = vadd.f32 %v784, %v822
  %v824 = vpop.f32.mrf.mxu0
  %v825 = vpop.f32.mrf.mxu0
  %v826 = vpop.f32.mrf.mxu0
  %827 = vdwg.mxu0
  %v828 = vld [vmem:[%s6] sm:$0xff]
  %v829 = vld [vmem:[%s6 + $0x8] sm:$0xff]
  %v830 = vld [vmem:[%s6 + $0x10] sm:$0xff]
  %v831 = vld [vmem:[%s6 + $0x18] sm:$0xff]
  %v832 = vld [vmem:[%s7] sm:$0x1]
  %v833 = vld [vmem:[%s8] sm:$0x1]
  %v835 = vsel %vm89, %v823, 0
  %837 = vmatprep.subr.mxu0 0.0
  %838 = vmatpush1.msra.mxu0 0.0
  %839 = vmatprep.subr.mxu0 0.0
  %840 = vmatpush1.msra.mxu0 0.0
  %841 = vmatprep.subr.mxu0 0.0
  %842 = vmatpush1.msra.mxu0 0.0
  %843 = vmatprep.subr.mxu0 0.0
  %844 = vmatpush1.msra.mxu0 0.0
  %845 = vmatprep.subr.mxu0 0.0
  %846 = vmatpush1.msra.mxu0 0.0
  %847 = vmatprep.subr.mxu0 0.0
  %848 = vmatpush1.msra.mxu0 0.0
  %849 = vmatprep.subr.mxu0 0.0
  %850 = vmatpush1.msra.mxu0 0.0
  %851 = vmatprep.subr.mxu0 0.0
  %852 = vmatpush1.msra.mxu0 0.0
  %853 = vmatprep.subr.mxu0 0.0
  %854 = vmatpush1.msra.mxu0 0.0
  %855 = vmatprep.subr.mxu0 0.0
  %856 = vmatpush1.msra.mxu0 0.0
  %857 = vmatprep.subr.mxu0 0.0
  %858 = vmatpush1.msra.mxu0 0.0
  %859 = vmatprep.subr.mxu0 0.0
  %860 = vmatpush1.msra.mxu0 0.0
  %861 = vmatprep.subr.mxu0 0.0
  %862 = vmatpush1.msra.mxu0 %v831
  %863 = vmatprep.subr.mxu0 0.0
  %864 = vmatpush1.msra.mxu0 %v830
  %865 = vmatprep.subr.mxu0 0.0
  %866 = vmatpush1.msra.mxu0 %v829
  %867 = vmatprep.subr.mxu0 0.0
  %868 = vmatpush1.msra.mxu0 %v828
  %869 = vmatprep.subr.mxu0 0.0
  %870 = vmatpush2.msra.mxu0 0.0
  %871 = vmatprep.subr.mxu0 0.0
  %872 = vmatpush2.msra.mxu0 0.0
  %873 = vmatprep.subr.mxu0 0.0
  %874 = vmatpush2.msra.mxu0 0.0
  %875 = vmatprep.subr.mxu0 0.0
  %876 = vmatpush2.msra.mxu0 0.0
  %877 = vmatprep.subr.mxu0 0.0
  %878 = vmatpush2.msra.mxu0 0.0
  %879 = vmatprep.subr.mxu0 0.0
  %880 = vmatpush2.msra.mxu0 0.0
  %881 = vmatprep.subr.mxu0 0.0
  %882 = vmatpush2.msra.mxu0 0.0
  %883 = vmatprep.subr.mxu0 0.0
  %884 = vmatpush2.msra.mxu0 0.0
  %885 = vmatprep.subr.mxu0 0.0
  %886 = vmatpush2.msra.mxu0 0.0
  %887 = vmatprep.subr.mxu0 0.0
  %888 = vmatpush2.msra.mxu0 0.0
  %889 = vmatprep.subr.mxu0 0.0
  %890 = vmatpush2.msra.mxu0 0.0
  %891 = vmatprep.subr.mxu0 0.0
  %892 = vmatpush2.msra.mxu0 0.0
  %893 = vmatprep.subr.mxu0 0.0
  %894 = vmatpush2.msra.mxu0 0.0
  %895 = vmatprep.subr.mxu0 0.0
  %896 = vmatpush2.msra.mxu0 0.0
  %897 = vmatprep.subr.mxu0 0.0
  %898 = vmatpush2.msra.mxu0 0.0
  %899 = vmatprep.subr.mxu0 0.0
  %900 = vmatpush2.msra.mxu0 0.0
  %901 = vmatprep.mubr.f32.mxu0 0.0
  %902 = vmatmul.mubr.f32.gmra.mxu0 %v835
  %v903 = vpop.f32.mrf.mxu0
  %v904 = vadd.f32 0.0, %v903
  %v905 = vpop.f32.mrf.mxu0
  %906 = vdwg.mxu0
  %v907 = vsub.f32 %v823, %v904
  %v908 = vmul.f32 %v907, %v907
  %v910 = vsel %vm89, %v908, 0
  %912 = vmatprep.subr.mxu0 0.0
  %913 = vmatpush1.msra.mxu0 0.0
  %914 = vmatprep.subr.mxu0 0.0
  %915 = vmatpush1.msra.mxu0 0.0
  %916 = vmatprep.subr.mxu0 0.0
  %917 = vmatpush1.msra.mxu0 0.0
  %918 = vmatprep.subr.mxu0 0.0
  %919 = vmatpush1.msra.mxu0 0.0
  %920 = vmatprep.subr.mxu0 0.0
  %921 = vmatpush1.msra.mxu0 0.0
  %922 = vmatprep.subr.mxu0 0.0
  %923 = vmatpush1.msra.mxu0 0.0
  %924 = vmatprep.subr.mxu0 0.0
  %925 = vmatpush1.msra.mxu0 0.0
  %926 = vmatprep.subr.mxu0 0.0
  %927 = vmatpush1.msra.mxu0 0.0
  %928 = vmatprep.subr.mxu0 0.0
  %929 = vmatpush1.msra.mxu0 0.0
  %930 = vmatprep.subr.mxu0 0.0
  %931 = vmatpush1.msra.mxu0 0.0
  %932 = vmatprep.subr.mxu0 0.0
  %933 = vmatpush1.msra.mxu0 0.0
  %934 = vmatprep.subr.mxu0 0.0
  %935 = vmatpush1.msra.mxu0 0.0
  %936 = vmatprep.subr.mxu0 0.0
  %937 = vmatpush1.msra.mxu0 %v831
  %938 = vmatprep.subr.mxu0 0.0
  %939 = vmatpush1.msra.mxu0 %v830
  %940 = vmatprep.subr.mxu0 0.0
  %941 = vmatpush1.msra.mxu0 %v829
  %942 = vmatprep.subr.mxu0 0.0
  %943 = vmatpush1.msra.mxu0 %v828
  %944 = vmatprep.subr.mxu0 0.0
  %945 = vmatpush2.msra.mxu0 0.0
  %946 = vmatprep.subr.mxu0 0.0
  %947 = vmatpush2.msra.mxu0 0.0
  %948 = vmatprep.subr.mxu0 0.0
  %949 = vmatpush2.msra.mxu0 0.0
  %950 = vmatprep.subr.mxu0 0.0
  %951 = vmatpush2.msra.mxu0 0.0
  %952 = vmatprep.subr.mxu0 0.0
  %953 = vmatpush2.msra.mxu0 0.0
  %954 = vmatprep.subr.mxu0 0.0
  %955 = vmatpush2.msra.mxu0 0.0
  %956 = vmatprep.subr.mxu0 0.0
  %957 = vmatpush2.msra.mxu0 0.0
  %958 = vmatprep.subr.mxu0 0.0
  %959 = vmatpush2.msra.mxu0 0.0
  %960 = vmatprep.subr.mxu0 0.0
  %961 = vmatpush2.msra.mxu0 0.0
  %962 = vmatprep.subr.mxu0 0.0
  %963 = vmatpush2.msra.mxu0 0.0
  %964 = vmatprep.subr.mxu0 0.0
  %965 = vmatpush2.msra.mxu0 0.0
  %966 = vmatprep.subr.mxu0 0.0
  %967 = vmatpush2.msra.mxu0 0.0
  %968 = vmatprep.subr.mxu0 0.0
  %969 = vmatpush2.msra.mxu0 0.0
  %970 = vmatprep.subr.mxu0 0.0
  %971 = vmatpush2.msra.mxu0 0.0
  %972 = vmatprep.subr.mxu0 0.0
  %973 = vmatpush2.msra.mxu0 0.0
  %974 = vmatprep.subr.mxu0 0.0
  %975 = vmatpush2.msra.mxu0 0.0
  %976 = vmatprep.mubr.f32.mxu0 0.0
  %977 = vmatmul.mubr.f32.gmra.mxu0 %v910
  %v978 = vpop.f32.mrf.mxu0
  %v979 = vadd.f32 1e-05, %v978
  %v980 = vpop.f32.mrf.mxu0
  %981 = vdwg.mxu0
  %v982 = vrsqrt.pop %v979
  %v983 = vmul.f32 %v907, %v982
  %v984 = vmul.f32 %v983, %v832
  %v985 = vadd.f32 %v984, %v833
  %v986 = vld [vmem:[#allocation3] sm:$0x1]
  %988 = vset.pattern.permute.xlu0 0
  %989 = vperm.xlu0 %988, %v986
  %v990 = vpop.permute.xlu0 %989
  %v992 = vlaneseq
  %v993 = vshrl.u32 %v992, 7
  %v994 = vsub.s32 0, %v993
  %v995 = vrot.slane %v990, %v994
  %v996 = vmul.f32 %v985, %v995
  %v997 = vld [vmem:[#allocation4] sm:$0x1]
  %999 = vset.pattern.permute.xlu0 0
  %1000 = vperm.xlu0 %999, %v997
  %v1001 = vpop.permute.xlu0 %1000
  %v1003 = vlaneseq
  %v1004 = vshrl.u32 %v1003, 7
  %v1005 = vsub.s32 0, %v1004
  %v1006 = vrot.slane %v1001, %v1005
  %v1007 = vadd.f32 %v996, %v1006
  %v1008 = vld [vmem:[%s11] sm:$0x1]
  %v1009 = vld [vmem:[%s12] sm:$0x1]
  %v1011 = vsel %vm89, %v1007, 0
  %1013 = vmatprep.subr.mxu0 0.0
  %1014 = vmatpush1.msra.mxu0 0.0
  %1015 = vmatprep.subr.mxu0 0.0
  %1016 = vmatpush1.msra.mxu0 0.0
  %1017 = vmatprep.subr.mxu0 0.0
  %1018 = vmatpush1.msra.mxu0 0.0
  %1019 = vmatprep.subr.mxu0 0.0
  %1020 = vmatpush1.msra.mxu0 0.0
  %1021 = vmatprep.subr.mxu0 0.0
  %1022 = vmatpush1.msra.mxu0 0.0
  %1023 = vmatprep.subr.mxu0 0.0
  %1024 = vmatpush1.msra.mxu0 0.0
  %1025 = vmatprep.subr.mxu0 0.0
  %1026 = vmatpush1.msra.mxu0 0.0
  %1027 = vmatprep.subr.mxu0 0.0
  %1028 = vmatpush1.msra.mxu0 0.0
  %1029 = vmatprep.subr.mxu0 0.0
  %1030 = vmatpush1.msra.mxu0 0.0
  %1031 = vmatprep.subr.mxu0 0.0
  %1032 = vmatpush1.msra.mxu0 0.0
  %1033 = vmatprep.subr.mxu0 0.0
  %1034 = vmatpush1.msra.mxu0 0.0
  %1035 = vmatprep.subr.mxu0 0.0
  %1036 = vmatpush1.msra.mxu0 0.0
  %1037 = vmatprep.subr.mxu0 0.0
  %1038 = vmatpush1.msra.mxu0 %v831
  %1039 = vmatprep.subr.mxu0 0.0
  %1040 = vmatpush1.msra.mxu0 %v830
  %1041 = vmatprep.subr.mxu0 0.0
  %1042 = vmatpush1.msra.mxu0 %v829
  %1043 = vmatprep.subr.mxu0 0.0
  %1044 = vmatpush1.msra.mxu0 %v828
  %1045 = vmatprep.subr.mxu0 0.0
  %1046 = vmatpush2.msra.mxu0 0.0
  %1047 = vmatprep.subr.mxu0 0.0
  %1048 = vmatpush2.msra.mxu0 0.0
  %1049 = vmatprep.subr.mxu0 0.0
  %1050 = vmatpush2.msra.mxu0 0.0
  %1051 = vmatprep.subr.mxu0 0.0
  %1052 = vmatpush2.msra.mxu0 0.0
  %1053 = vmatprep.subr.mxu0 0.0
  %1054 = vmatpush2.msra.mxu0 0.0
  %1055 = vmatprep.subr.mxu0 0.0
  %1056 = vmatpush2.msra.mxu0 0.0
  %1057 = vmatprep.subr.mxu0 0.0
  %1058 = vmatpush2.msra.mxu0 0.0
  %1059 = vmatprep.subr.mxu0 0.0
  %1060 = vmatpush2.msra.mxu0 0.0
  %1061 = vmatprep.subr.mxu0 0.0
  %1062 = vmatpush2.msra.mxu0 0.0
  %1063 = vmatprep.subr.mxu0 0.0
  %1064 = vmatpush2.msra.mxu0 0.0
  %1065 = vmatprep.subr.mxu0 0.0
  %1066 = vmatpush2.msra.mxu0 0.0
  %1067 = vmatprep.subr.mxu0 0.0
  %1068 = vmatpush2.msra.mxu0 0.0
  %1069 = vmatprep.subr.mxu0 0.0
  %1070 = vmatpush2.msra.mxu0 0.0
  %1071 = vmatprep.subr.mxu0 0.0
  %1072 = vmatpush2.msra.mxu0 0.0
  %1073 = vmatprep.subr.mxu0 0.0
  %1074 = vmatpush2.msra.mxu0 0.0
  %1075 = vmatprep.subr.mxu0 0.0
  %1076 = vmatpush2.msra.mxu0 0.0
  %1077 = vmatprep.mubr.f32.mxu0 0.0
  %1078 = vmatmul.mubr.f32.gmra.mxu0 %v1011
  %v1079 = vpop.f32.mrf.mxu0
  %v1080 = vadd.f32 0.0, %v1079
  %v1081 = vpop.f32.mrf.mxu0
  %1082 = vdwg.mxu0
  %v1083 = vsub.f32 %v1007, %v1080
  %v1084 = vmul.f32 %v1083, %v1083
  %v1086 = vsel %vm89, %v1084, 0
  %1088 = vmatprep.subr.mxu0 0.0
  %1089 = vmatpush1.msra.mxu0 0.0
  %1090 = vmatprep.subr.mxu0 0.0
  %1091 = vmatpush1.msra.mxu0 0.0
  %1092 = vmatprep.subr.mxu0 0.0
  %1093 = vmatpush1.msra.mxu0 0.0
  %1094 = vmatprep.subr.mxu0 0.0
  %1095 = vmatpush1.msra.mxu0 0.0
  %1096 = vmatprep.subr.mxu0 0.0
  %1097 = vmatpush1.msra.mxu0 0.0
  %1098 = vmatprep.subr.mxu0 0.0
  %1099 = vmatpush1.msra.mxu0 0.0
  %1100 = vmatprep.subr.mxu0 0.0
  %1101 = vmatpush1.msra.mxu0 0.0
  %1102 = vmatprep.subr.mxu0 0.0
  %1103 = vmatpush1.msra.mxu0 0.0
  %1104 = vmatprep.subr.mxu0 0.0
  %1105 = vmatpush1.msra.mxu0 0.0
  %1106 = vmatprep.subr.mxu0 0.0
  %1107 = vmatpush1.msra.mxu0 0.0
  %1108 = vmatprep.subr.mxu0 0.0
  %1109 = vmatpush1.msra.mxu0 0.0
  %1110 = vmatprep.subr.mxu0 0.0
  %1111 = vmatpush1.msra.mxu0 0.0
  %1112 = vmatprep.subr.mxu0 0.0
  %1113 = vmatpush1.msra.mxu0 %v831
  %1114 = vmatprep.subr.mxu0 0.0
  %1115 = vmatpush1.msra.mxu0 %v830
  %1116 = vmatprep.subr.mxu0 0.0
  %1117 = vmatpush1.msra.mxu0 %v829
  %1118 = vmatprep.subr.mxu0 0.0
  %1119 = vmatpush1.msra.mxu0 %v828
  %1120 = vmatprep.subr.mxu0 0.0
  %1121 = vmatpush2.msra.mxu0 0.0
  %1122 = vmatprep.subr.mxu0 0.0
  %1123 = vmatpush2.msra.mxu0 0.0
  %1124 = vmatprep.subr.mxu0 0.0
  %1125 = vmatpush2.msra.mxu0 0.0
  %1126 = vmatprep.subr.mxu0 0.0
  %1127 = vmatpush2.msra.mxu0 0.0
  %1128 = vmatprep.subr.mxu0 0.0
  %1129 = vmatpush2.msra.mxu0 0.0
  %1130 = vmatprep.subr.mxu0 0.0
  %1131 = vmatpush2.msra.mxu0 0.0
  %1132 = vmatprep.subr.mxu0 0.0
  %1133 = vmatpush2.msra.mxu0 0.0
  %1134 = vmatprep.subr.mxu0 0.0
  %1135 = vmatpush2.msra.mxu0 0.0
  %1136 = vmatprep.subr.mxu0 0.0
  %1137 = vmatpush2.msra.mxu0 0.0
  %1138 = vmatprep.subr.mxu0 0.0
  %1139 = vmatpush2.msra.mxu0 0.0
  %1140 = vmatprep.subr.mxu0 0.0
  %1141 = vmatpush2.msra.mxu0 0.0
  %1142 = vmatprep.subr.mxu0 0.0
  %1143 = vmatpush2.msra.mxu0 0.0
  %1144 = vmatprep.subr.mxu0 0.0
  %1145 = vmatpush2.msra.mxu0 0.0
  %1146 = vmatprep.subr.mxu0 0.0
  %1147 = vmatpush2.msra.mxu0 0.0
  %1148 = vmatprep.subr.mxu0 0.0
  %1149 = vmatpush2.msra.mxu0 0.0
  %1150 = vmatprep.subr.mxu0 0.0
  %1151 = vmatpush2.msra.mxu0 0.0
  %1152 = vmatprep.mubr.f32.mxu0 0.0
  %1153 = vmatmul.mubr.f32.gmra.mxu0 %v1086
  %v1154 = vpop.f32.mrf.mxu0
  %v1155 = vadd.f32 1e-05, %v1154
  %v1156 = vpop.f32.mrf.mxu0
  %1157 = vdwg.mxu0
  %v1158 = vrsqrt.pop %v1155
  %v1159 = vmul.f32 %v1083, %v1158
  %v1160 = vmul.f32 %v1159, %v1008
  %v1161 = vadd.f32 %v1160, %v1009
  %v1162 = vld [vmem:[%s13] sm:$0xff]
  %v1163 = vld [vmem:[%s13 + $0x8] sm:$0xff]
  %v1164 = vld [vmem:[%s13 + $0x10] sm:$0xff]
  %v1165 = vld [vmem:[%s13 + $0x18] sm:$0xff]
  %v1166 = vld [vmem:[#allocation5] sm:$0x1]
  %1168 = vset.pattern.permute.xlu0 0
  %1169 = vperm.xlu0 %1168, %v1166
  %v1170 = vpop.permute.xlu0 %1169
  %v1172 = vlaneseq
  %v1173 = vshrl.u32 %v1172, 7
  %v1174 = vsub.s32 0, %v1173
  %v1175 = vrot.slane %v1170, %v1174
  %v1177 = vsel %vm89, %v1161, 0
  %1179 = vmatprep.subr.mxu0 0.0
  %1180 = vmatpush1.msra.mxu0 0.0
  %1181 = vmatprep.subr.mxu0 0.0
  %1182 = vmatpush1.msra.mxu0 0.0
  %1183 = vmatprep.subr.mxu0 0.0
  %1184 = vmatpush1.msra.mxu0 0.0
  %1185 = vmatprep.subr.mxu0 0.0
  %1186 = vmatpush1.msra.mxu0 0.0
  %1187 = vmatprep.subr.mxu0 0.0
  %1188 = vmatpush1.msra.mxu0 0.0
  %1189 = vmatprep.subr.mxu0 0.0
  %1190 = vmatpush1.msra.mxu0 0.0
  %1191 = vmatprep.subr.mxu0 0.0
  %1192 = vmatpush1.msra.mxu0 0.0
  %1193 = vmatprep.subr.mxu0 0.0
  %1194 = vmatpush1.msra.mxu0 0.0
  %1195 = vmatprep.subr.mxu0 0.0
  %1196 = vmatpush1.msra.mxu0 0.0
  %1197 = vmatprep.subr.mxu0 0.0
  %1198 = vmatpush1.msra.mxu0 0.0
  %1199 = vmatprep.subr.mxu0 0.0
  %1200 = vmatpush1.msra.mxu0 0.0
  %1201 = vmatprep.subr.mxu0 0.0
  %1202 = vmatpush1.msra.mxu0 0.0
  %1203 = vmatprep.subr.mxu0 0.0
  %1204 = vmatpush1.msra.mxu0 %v1165
  %1205 = vmatprep.subr.mxu0 0.0
  %1206 = vmatpush1.msra.mxu0 %v1164
  %1207 = vmatprep.subr.mxu0 0.0
  %1208 = vmatpush1.msra.mxu0 %v1163
  %1209 = vmatprep.subr.mxu0 0.0
  %1210 = vmatpush1.msra.mxu0 %v1162
  %1211 = vmatprep.subr.mxu0 0.0
  %1212 = vmatpush2.msra.mxu0 0.0
  %1213 = vmatprep.subr.mxu0 0.0
  %1214 = vmatpush2.msra.mxu0 0.0
  %1215 = vmatprep.subr.mxu0 0.0
  %1216 = vmatpush2.msra.mxu0 0.0
  %1217 = vmatprep.subr.mxu0 0.0
  %1218 = vmatpush2.msra.mxu0 0.0
  %1219 = vmatprep.subr.mxu0 0.0
  %1220 = vmatpush2.msra.mxu0 0.0
  %1221 = vmatprep.subr.mxu0 0.0
  %1222 = vmatpush2.msra.mxu0 0.0
  %1223 = vmatprep.subr.mxu0 0.0
  %1224 = vmatpush2.msra.mxu0 0.0
  %1225 = vmatprep.subr.mxu0 0.0
  %1226 = vmatpush2.msra.mxu0 0.0
  %1227 = vmatprep.subr.mxu0 0.0
  %1228 = vmatpush2.msra.mxu0 0.0
  %1229 = vmatprep.subr.mxu0 0.0
  %1230 = vmatpush2.msra.mxu0 0.0
  %1231 = vmatprep.subr.mxu0 0.0
  %1232 = vmatpush2.msra.mxu0 0.0
  %1233 = vmatprep.subr.mxu0 0.0
  %1234 = vmatpush2.msra.mxu0 0.0
  %1235 = vmatprep.subr.mxu0 0.0
  %1236 = vmatpush2.msra.mxu0 0.0
  %1237 = vmatprep.subr.mxu0 0.0
  %1238 = vmatpush2.msra.mxu0 0.0
  %1239 = vmatprep.subr.mxu0 0.0
  %1240 = vmatpush2.msra.mxu0 0.0
  %1241 = vmatprep.subr.mxu0 0.0
  %1242 = vmatpush2.msra.mxu0 0.0
  %1243 = vmatprep.mubr.f32.mxu0 0.0
  %1244 = vmatmul.mubr.f32.gmra.mxu0 %v1177
  %v1245 = vpop.f32.mrf.mxu0
  %v1246 = vadd.f32 %v1175, %v1245
  %v1247 = vpop.f32.mrf.mxu0
  %1248 = vdwg.mxu0
  %vm1249 = vcmask 40960
  %1250 = vst.msk [vmem:[%s15] sm:$0x1] %vm1249, %v1246
  // Predicated region
  $region62: #{_lambda_.1} parent=0 // pred_check
    _
  $region63: #{_lambda_.1} parent=0 // pred_check_branch
    %1252 = sbr.rel (0) target = $region65
  $region64: #{_lambda_.1} parent=0 // pred_region
    _
  $region65: #{_lambda_.1} parent=0 // pred_fallthru
    _
  // Predicated region
  $region66: #{_lambda_.1} parent=0 // pred_check
    _
  $region67: #{_lambda_.1} parent=0 // pred_check_branch
    %1254 = sbr.rel (0) target = $region69
  $region68: #{_lambda_.1} parent=0 // pred_region
    _
  $region69: #{_lambda_.1} parent=0 // pred_fallthru
    _

</llo_original>
